<compile_context>
chip_gen: v7x
topology: tpu7x:2x2x1
jax: 0.10.0
libtpu: 0.0.40
codegen_flags: <defaults>
</compile_context>

<pallas_src>
import functools

import jax
import jax.numpy as jnp
from jax.experimental import pallas as pl
from jax.experimental.pallas import tpu as pltpu


# --------------------------------------------------------------------------
# helpers
# --------------------------------------------------------------------------
def _round_up(x, m):
    return ((x + m - 1) // m) * m


def _largest_divisor_leq(n, cap):
    cap = max(1, min(cap, n))
    for d in range(cap, 0, -1):
        if n % d == 0:
            return d
    return 1


def _vmem_limits():
    """Generation-aware (limit, tile_budget) in bytes."""
    cap = None
    try:
        info = pltpu.get_tpu_info()
        cap = getattr(info, "vmem_capacity_bytes", None)
    except Exception:
        cap = None
    if not cap:
        try:
            kind = jax.devices()[0].device_kind.lower()
        except Exception:
            kind = ""
        if "v7" in kind:
            cap = 64 * 1024 * 1024
        elif any(v in kind for v in ("v4", "v5", "v6")):
            cap = 128 * 1024 * 1024
        else:
            cap = 64 * 1024 * 1024          # conservative default
    vmem_limit = min(int(cap * 3 // 4), 112 * 1024 * 1024)   # 48 MiB v7x, 96 MiB v5e/v6e
    vmem_limit = max(vmem_limit, 16 * 1024 * 1024)
    tile_budget = max(vmem_limit - 8 * 1024 * 1024, 8 * 1024 * 1024)  # headroom for weights/scratch
    return int(vmem_limit), int(tile_budget)


# --------------------------------------------------------------------------
# kernels
# --------------------------------------------------------------------------
def _fused_kernel(snr_ref, x_ref, w1s_ref, w1p_ref, b1_ref, w2_ref, b2_ref,
                  out_ref, *, inv_hw, tb):
    """Whole (TB, C, HW) slab resident: pool -> MLP -> gate -> store."""
    b = pl.program_id(0)
    x = x_ref[...]                                        # (TB, C, HW)
    pooled = jnp.sum(x, axis=2) * inv_hw                  # (TB, C) == AdaptiveAvgPool2d(1)
    snr = snr_ref[pl.ds(b * tb, tb), :]                   # (TB, 1)  (SNR kept resident, tiny)
    # torch.cat((SNR, pooled), 1) @ W1  ==  SNR * W1[0] + pooled @ W1[1:]
    h = (snr * w1s_ref[...]
         + jnp.dot(pooled, w1p_ref[...], preferred_element_type=jnp.float32)
         + b1_ref[...])                                   # (TB, Hdim)
    h = jnp.maximum(h, 0.0)                               # ReLU
    logits = jnp.dot(h, w2_ref[...],
                     preferred_element_type=jnp.float32) + b2_ref[...]   # (TB, C)
    scale = jax.nn.sigmoid(logits)                        # Sigmoid
    # Broadcast per-channel scale across lanes; store lane-dense.
    out_ref[...] = (x * scale[:, :, None]).astype(out_ref.dtype)


def _pool_mlp_kernel(snr_ref, x_ref, w1s_ref, w1p_ref, b1_ref, w2_ref, b2_ref,
                     scale_ref, acc_ref, *, inv_hw, hw, thw, tb):
    """Fallback pass 1: spatial-tiled pooling (masked last tile) + MLP."""
    s = pl.program_id(1)

    @pl.when(s == 0)
    def _():
        acc_ref[...] = jnp.zeros_like(acc_ref)

    x = x_ref[...]                                        # (TB, C, THW)
    if hw % thw == 0:
        acc_ref[...] += jnp.sum(x, axis=2)
    else:
        # Last spatial tile extends past HW -> mask padded lanes out of the sum.
        col = jax.lax.broadcasted_iota(jnp.int32, (1, 1, thw), 2) + s * thw
        acc_ref[...] += jnp.sum(jnp.where(col < hw, x, 0.0), axis=2)

    @pl.when(s == pl.num_programs(1) - 1)
    def _():
        b = pl.program_id(0)
        pooled = acc_ref[...] * inv_hw                    # (TB, C)
        snr = snr_ref[pl.ds(b * tb, tb), :]               # (TB, 1)
        h = (snr * w1s_ref[...]
             + jnp.dot(pooled, w1p_ref[...], preferred_element_type=jnp.float32)
             + b1_ref[...])
        h = jnp.maximum(h, 0.0)
        logits = jnp.dot(h, w2_ref[...],
                         preferred_element_type=jnp.float32) + b2_ref[...]
        # Write scale directly as (TB, C, 1): channels on sublanes, no inter-pass relayout.
        scale_ref[...] = jax.nn.sigmoid(logits)[:, :, None]


def _gate_kernel(scale_ref, x_ref, out_ref):
    """Fallback pass 2: lane-dense channel gating (pure streaming)."""
    out_ref[...] = (x_ref[...] * scale_ref[...]).astype(out_ref.dtype)


# --------------------------------------------------------------------------
# wrapper
# --------------------------------------------------------------------------
def snr_attention(x_nchw, snr, w1, b1, w2, b2):
    """x_nchw: (B, C, H, W) f32, snr: (B, 1) f32.
    w1: (C+1, Hdim), b1: (Hdim,), w2: (Hdim, C), b2: (C,)  (stored as (in, out))."""
    B, C, H, W = x_nchw.shape
    HW = H * W
    Hdim = w1.shape[1]
    if Hdim < 1:
        raise ValueError("SNRAttention requires (C + 1) // 16 >= 1")

    vmem_limit, tile_budget = _vmem_limits()

    x_flat = x_nchw.reshape(B, C, HW)          # contiguous reshape: no data movement
    b1_2d = b1.reshape(1, Hdim)
    b2_2d = b2.reshape(1, C)
    w1_snr = w1[0:1, :]                        # (1, Hdim)  host-side split: free,
    w1_pool = w1[1:, :]                        # (C, Hdim)  avoids unaligned in-kernel slice

    c_pad = _round_up(C, 8)
    f32 = 4

    # TB cap: >= 2 batch blocks whenever B >= 2 so the parallel axis feeds both
    # v7x TensorCores (harmless on single-TC v5e/v6e; blocks stay large).
    tb_cap = B if B < 2 else max(1, B // 2)

    # ---------------- fused single-pass path ----------------
    hw_pad = _round_up(HW, 128)

    def fused_block_bytes(tb):
        # x in-block + out-block, each double-buffered, with sublane/lane padding.
        return 4 * tb * c_pad * hw_pad * f32

    tb = _largest_divisor_leq(B, tb_cap)
    while tb > 1 and fused_block_bytes(tb) > tile_budget:
        tb = _largest_divisor_leq(B, tb - 1)

    if fused_block_bytes(tb) <= tile_budget:
        out_flat = pl.pallas_call(
            functools.partial(_fused_kernel, inv_hw=1.0 / HW, tb=tb),
            out_shape=jax.ShapeDtypeStruct((B, C, HW), x_nchw.dtype),
            grid_spec=pltpu.PrefetchScalarGridSpec(
                num_scalar_prefetch=0,
                grid=(B // tb,),
                in_specs=[
                    pl.BlockSpec((B, 1), lambda b: (0, 0)),           # SNR (full, resident)
                    pl.BlockSpec((tb, C, HW), lambda b: (b, 0, 0)),   # x
                    pl.BlockSpec((1, Hdim), lambda b: (0, 0)),        # W1[0]  (SNR column)
                    pl.BlockSpec((C, Hdim), lambda b: (0, 0)),        # W1[1:] (pool rows)
                    pl.BlockSpec((1, Hdim), lambda b: (0, 0)),        # b1
                    pl.BlockSpec((Hdim, C), lambda b: (0, 0)),        # W2
                    pl.BlockSpec((1, C), lambda b: (0, 0)),           # b2
                ],
                out_specs=pl.BlockSpec((tb, C, HW), lambda b: (b, 0, 0)),
            ),
            compiler_params=pltpu.CompilerParams(
                dimension_semantics=("parallel",),
                vmem_limit_bytes=vmem_limit),
        )(snr, x_flat, w1_snr, w1_pool, b1_2d, w2, b2_2d)
        return out_flat.reshape(B, C, H, W)

    # ---------------- fallback two-pass path (huge C*HW slabs) ----------------
    # Spatial tile: lane-dense multiple of 128 sized to the VMEM budget
    # (pass 2 is the binding one: in+out blocks, double-buffered).
    max_thw = tile_budget // (4 * c_pad * f32)            # elements per lane tile
    if HW <= 128 or HW <= max_thw:
        thw = HW
    else:
        thw = max(128, (min(HW, max_thw) // 128) * 128)
    thw = min(thw, HW)
    thw_pad = _round_up(thw, 128)
    n_s = (HW + thw - 1) // thw                           # cdiv: last tile masked

    tb = _largest_divisor_leq(B, tb_cap)
    while tb > 1 and 4 * tb * c_pad * thw_pad * f32 > tile_budget:
        tb = _largest_divisor_leq(B, tb - 1)

    # pass 1 (small output): pooling + MLP -> per-channel scale (B, C, 1)
    scale_bc1 = pl.pallas_call(
        functools.partial(_pool_mlp_kernel, inv_hw=1.0 / HW, hw=HW, thw=thw, tb=tb),
        out_shape=jax.ShapeDtypeStruct((B, C, 1), jnp.float32),
        grid_spec=pltpu.PrefetchScalarGridSpec(
            num_scalar_prefetch=0,
            grid=(B // tb, n_s),
            in_specs=[
                pl.BlockSpec((B, 1), lambda b, s: (0, 0)),            # SNR
                pl.BlockSpec((tb, C, thw), lambda b, s: (b, 0, s)),   # x
                pl.BlockSpec((1, Hdim), lambda b, s: (0, 0)),         # W1[0]
                pl.BlockSpec((C, Hdim), lambda b, s: (0, 0)),         # W1[1:]
                pl.BlockSpec((1, Hdim), lambda b, s: (0, 0)),         # b1
                pl.BlockSpec((Hdim, C), lambda b, s: (0, 0)),         # W2
                pl.BlockSpec((1, C), lambda b, s: (0, 0)),            # b2
            ],
            out_specs=pl.BlockSpec((tb, C, 1), lambda b, s: (b, 0, 0)),
            scratch_shapes=[pltpu.VMEM((tb, C), jnp.float32)],
        ),
        compiler_params=pltpu.CompilerParams(
            dimension_semantics=("parallel", "arbitrary"),
            vmem_limit_bytes=vmem_limit),
    )(snr, x_flat, w1_snr, w1_pool, b1_2d, w2, b2_2d)

    # pass 2 (bandwidth-bound): lane-dense gating  out = x * scale
    out_flat = pl.pallas_call(
        _gate_kernel,
        out_shape=jax.ShapeDtypeStruct((B, C, HW), x_nchw.dtype),
        grid_spec=pltpu.PrefetchScalarGridSpec(
            num_scalar_prefetch=0,
            grid=(B // tb, n_s),
            in_specs=[
                pl.BlockSpec((tb, C, 1), lambda b, s: (b, 0, 0)),     # scale (same layout as pass-1 out)
                pl.BlockSpec((tb, C, thw), lambda b, s: (b, 0, s)),   # x
            ],
            out_specs=pl.BlockSpec((tb, C, thw), lambda b, s: (b, 0, s)),
        ),
        compiler_params=pltpu.CompilerParams(
            dimension_semantics=("parallel", "parallel"),
            vmem_limit_bytes=vmem_limit),
    )(scale_bc1, x_flat)

    return out_flat.reshape(B, C, H, W)


# --------------------------------------------------------------------------
# reference + test
# --------------------------------------------------------------------------
def reference(x_nchw, snr, w1, b1, w2, b2):
    """Pure-JAX reference matching the PyTorch forward."""
    pooled = jnp.mean(x_nchw, axis=(2, 3))                 # (B, C)
    ctx = jnp.concatenate([snr, pooled], axis=1)           # (B, C+1)
    h = jax.nn.relu(ctx @ w1 + b1)
    scale = jax.nn.sigmoid(h @ w2 + b2)                    # (B, C)
    return x_nchw * scale[:, :, None, None]


if __name__ == "__main__":
    # nn.Linear(C+1, (C+1)//16) requires C+1 >= 16 for a nonzero hidden dim.
    B, C, H, W = 2, 31, 16, 16
    Hdim = (C + 1) // 16  # = 2

    key = jax.random.PRNGKey(0)
    kx, ks, k1, k2, k3, k4 = jax.random.split(key, 6)

    x = jax.random.normal(kx, (B, C, H, W), dtype=jnp.float32)
    snr = jax.random.uniform(ks, (B, 1), dtype=jnp.float32) * 20.0

    # Deterministic parameter init (stored as (in, out), i.e. PyTorch weight^T).
    w1 = jax.random.normal(k1, (C + 1, Hdim), dtype=jnp.float32) * 0.1
    b1 = jax.random.normal(k2, (Hdim,), dtype=jnp.float32) * 0.1
    w2 = jax.random.normal(k3, (Hdim, C), dtype=jnp.float32) * 0.1
    b2 = jax.random.normal(k4, (C,), dtype=jnp.float32) * 0.1

    out = snr_attention(x, snr, w1, b1, w2, b2)
    out = jax.block_until_ready(out)

    ref = reference(x, snr, w1, b1, w2, b2)
    assert out.shape == (B, C, H, W)
    assert jnp.allclose(out, ref, atol=1e-5, rtol=1e-5), "mismatch vs reference"

    print("KERNEL_OK")
</pallas_src>

<mosaic_0001>
module attributes {stable_mosaic.version = 11 : i64} {
  func.func @_fused_kernel(%arg0: i32, %arg1: memref<2x1xf32, #tpu.memory_space<vmem>>, %arg2: memref<1x31x256xf32, #tpu.memory_space<vmem>>, %arg3: memref<1x2xf32, #tpu.memory_space<vmem>>, %arg4: memref<31x2xf32, #tpu.memory_space<vmem>>, %arg5: memref<1x2xf32, #tpu.memory_space<vmem>>, %arg6: memref<2x31xf32, #tpu.memory_space<vmem>>, %arg7: memref<1x31xf32, #tpu.memory_space<vmem>>, %arg8: memref<1x31x256xf32, #tpu.memory_space<vmem>>) attributes {dimension_semantics = [#tpu.dimension_semantics<parallel>], iteration_bounds = array<i64: 2>, scalar_prefetch = 0 : i64, scratch_operands = 0 : i64, tpu.core_type = #tpu.core_type<tc>, window_params = [{pipeline_mode = #tpu.pipeline_mode<synchronous>, transform_indices = @transform_0, window_bounds = array<i64: 2, 1>}, {transform_indices = @transform_1, window_bounds = array<i64: 1, 31, 256>}, {pipeline_mode = #tpu.pipeline_mode<synchronous>, transform_indices = @transform_2, window_bounds = array<i64: 1, 2>}, {pipeline_mode = #tpu.pipeline_mode<synchronous>, transform_indices = @transform_3, window_bounds = array<i64: 31, 2>}, {pipeline_mode = #tpu.pipeline_mode<synchronous>, transform_indices = @transform_4, window_bounds = array<i64: 1, 2>}, {pipeline_mode = #tpu.pipeline_mode<synchronous>, transform_indices = @transform_5, window_bounds = array<i64: 2, 31>}, {pipeline_mode = #tpu.pipeline_mode<synchronous>, transform_indices = @transform_6, window_bounds = array<i64: 1, 31>}, {transform_indices = @transform_7, window_bounds = array<i64: 1, 31, 256>}]} {
    %c0 = arith.constant 0 : index
    %c0_0 = arith.constant 0 : index
    %c0_1 = arith.constant 0 : index
    %0 = vector.load %arg2[%c0, %c0_0, %c0_1] : memref<1x31x256xf32, #tpu.memory_space<vmem>>, vector<1x31x256xf32>
    %cst = arith.constant dense<0.000000e+00> : vector<1x31xf32>
    %1 = vector.multi_reduction <add>, %0, %cst [2] : vector<1x31x256xf32> to vector<1x31xf32>
    %cst_2 = arith.constant 3.906250e-03 : f32
    %2 = vector.broadcast %cst_2 : f32 to vector<1x31xf32>
    %3 = arith.mulf %1, %2 : vector<1x31xf32>
    %c1_i32 = arith.constant 1 : i32
    %4 = arith.muli %arg0, %c1_i32 : i32
    %5 = arith.index_cast %4 : i32 to index
    %c0_3 = arith.constant 0 : index
    %6 = vector.load %arg1[%5, %c0_3] : memref<2x1xf32, #tpu.memory_space<vmem>>, vector<1x1xf32>
    %c0_4 = arith.constant 0 : index
    %c0_5 = arith.constant 0 : index
    %7 = vector.load %arg3[%c0_4, %c0_5] : memref<1x2xf32, #tpu.memory_space<vmem>>, vector<1x2xf32>
    %8 = vector.broadcast %6 : vector<1x1xf32> to vector<1x2xf32>
    %9 = arith.mulf %8, %7 : vector<1x2xf32>
    %c0_6 = arith.constant 0 : index
    %c0_7 = arith.constant 0 : index
    %10 = vector.load %arg4[%c0_6, %c0_7] : memref<31x2xf32, #tpu.memory_space<vmem>>, vector<31x2xf32>
    %cst_8 = arith.constant dense<0.000000e+00> : vector<1x2xf32>
    %11 = tpu.matmul %3, %10, %cst_8 {dimension_numbers = #tpu.dot_dimension_numbers<[1], [0], [0], [1], [0, 0, 1, 1], [], []>} : vector<1x31xf32>, vector<31x2xf32>, vector<1x2xf32> -> vector<1x2xf32>
    %12 = arith.addf %9, %11 : vector<1x2xf32>
    %c0_9 = arith.constant 0 : index
    %c0_10 = arith.constant 0 : index
    %13 = vector.load %arg5[%c0_9, %c0_10] : memref<1x2xf32, #tpu.memory_space<vmem>>, vector<1x2xf32>
    %14 = arith.addf %12, %13 : vector<1x2xf32>
    %cst_11 = arith.constant 0.000000e+00 : f32
    %15 = vector.broadcast %cst_11 : f32 to vector<1x2xf32>
    %16 = arith.maximumf %14, %15 : vector<1x2xf32>
    %c0_12 = arith.constant 0 : index
    %c0_13 = arith.constant 0 : index
    %17 = vector.load %arg6[%c0_12, %c0_13] : memref<2x31xf32, #tpu.memory_space<vmem>>, vector<2x31xf32>
    %cst_14 = arith.constant dense<0.000000e+00> : vector<1x31xf32>
    %18 = tpu.matmul %16, %17, %cst_14 {dimension_numbers = #tpu.dot_dimension_numbers<[1], [0], [0], [1], [0, 0, 1, 1], [], []>} : vector<1x2xf32>, vector<2x31xf32>, vector<1x31xf32> -> vector<1x31xf32>
    %c0_15 = arith.constant 0 : index
    %c0_16 = arith.constant 0 : index
    %19 = vector.load %arg7[%c0_15, %c0_16] : memref<1x31xf32, #tpu.memory_space<vmem>>, vector<1x31xf32>
    %20 = arith.addf %18, %19 : vector<1x31xf32>
    %21 = arith.negf %20 : vector<1x31xf32>
    %22 = math.exp %21 : vector<1x31xf32>
    %cst_17 = arith.constant 1.000000e+00 : f32
    %23 = vector.broadcast %cst_17 : f32 to vector<1x31xf32>
    %24 = arith.addf %23, %22 : vector<1x31xf32>
    %25 = arith.divf %23, %24 : vector<1x31xf32>
    %26 = vector.shape_cast %25 : vector<1x31xf32> to vector<1x31x1xf32>
    %27 = vector.broadcast %26 : vector<1x31x1xf32> to vector<1x31x256xf32>
    %28 = arith.mulf %0, %27 : vector<1x31x256xf32>
    %c0_18 = arith.constant 0 : index
    %c0_19 = arith.constant 0 : index
    %c0_20 = arith.constant 0 : index
    %29 = vector.load %arg8[%c0_18, %c0_19, %c0_20] : memref<1x31x256xf32, #tpu.memory_space<vmem>>, vector<1x31x256xf32>
    tpu.vector_store %arg8[%c0_18, %c0_19, %c0_20], %28 {strides = array<i32>} : memref<1x31x256xf32, #tpu.memory_space<vmem>>, vector<1x31x256xf32>,
    return
  }
  func.func @transform_0(%arg0: i32) -> (i32, i32) {
    %c0_i32 = arith.constant 0 : i32
    %c0_i32_0 = arith.constant 0 : i32
    %c0_i32_1 = arith.constant 0 : i32
    return %c0_i32, %c0_i32_0 : i32, i32
  }
  func.func @transform_1(%arg0: i32) -> (i32, i32, i32) {
    %c0_i32 = arith.constant 0 : i32
    %c0_i32_0 = arith.constant 0 : i32
    %c0_i32_1 = arith.constant 0 : i32
    return %arg0, %c0_i32, %c0_i32_0 : i32, i32, i32
  }
  func.func @transform_2(%arg0: i32) -> (i32, i32) {
    %c0_i32 = arith.constant 0 : i32
    %c0_i32_0 = arith.constant 0 : i32
    %c0_i32_1 = arith.constant 0 : i32
    return %c0_i32, %c0_i32_0 : i32, i32
  }
  func.func @transform_3(%arg0: i32) -> (i32, i32) {
    %c0_i32 = arith.constant 0 : i32
    %c0_i32_0 = arith.constant 0 : i32
    %c0_i32_1 = arith.constant 0 : i32
    return %c0_i32, %c0_i32_0 : i32, i32
  }
  func.func @transform_4(%arg0: i32) -> (i32, i32) {
    %c0_i32 = arith.constant 0 : i32
    %c0_i32_0 = arith.constant 0 : i32
    %c0_i32_1 = arith.constant 0 : i32
    return %c0_i32, %c0_i32_0 : i32, i32
  }
  func.func @transform_5(%arg0: i32) -> (i32, i32) {
    %c0_i32 = arith.constant 0 : i32
    %c0_i32_0 = arith.constant 0 : i32
    %c0_i32_1 = arith.constant 0 : i32
    return %c0_i32, %c0_i32_0 : i32, i32
  }
  func.func @transform_6(%arg0: i32) -> (i32, i32) {
    %c0_i32 = arith.constant 0 : i32
    %c0_i32_0 = arith.constant 0 : i32
    %c0_i32_1 = arith.constant 0 : i32
    return %c0_i32, %c0_i32_0 : i32, i32
  }
  func.func @transform_7(%arg0: i32) -> (i32, i32, i32) {
    %c0_i32 = arith.constant 0 : i32
    %c0_i32_0 = arith.constant 0 : i32
    %c0_i32_1 = arith.constant 0 : i32
    return %arg0, %c0_i32, %c0_i32_0 : i32, i32, i32
  }
}

</mosaic_0001>

<llo_original>
// kernel: tpu_custom_call.1
$region0: #{tpu_custom_call.1}
  #allocation0 [shape = 'u32[]', space=smem, size = 0x4, offset = 0x4, fixed_abs, tag = 'smem constant byte address 0x4 - core index']
  #allocation1 [shape = 'u32[144,128]{1,0:T(1,128)}', space=vmem, size = 0x12000, scoped, tag = 'internal scratch']
  %s0 = inlined_call_operand.vmem [shape: f32[2,1], index: 0, kind: input, shape index: {}]
  %s1 = inlined_call_operand.vmem [shape: f32[2,31,256], index: 1, kind: input, shape index: {}]
  %s2 = inlined_call_operand.vmem [shape: f32[1,2], index: 2, kind: input, shape index: {}]
  %s3 = inlined_call_operand.vmem [shape: f32[31,2], index: 3, kind: input, shape index: {}]
  %s4 = inlined_call_operand.vmem [shape: f32[1,2], index: 4, kind: input, shape index: {}]
  %s5 = inlined_call_operand.vmem [shape: f32[2,31], index: 5, kind: input, shape index: {}]
  %s6 = inlined_call_operand.vmem [shape: f32[1,31], index: 6, kind: input, shape index: {}]
  %s7 = inlined_call_operand.vmem [shape: f32[2,31,256], index: 7, kind: output, shape index: {}]
  %s8 = sld [smem:[#allocation0]]
  $region61: #{tpu_custom_call.1} parent=0
    _
  %s10 = ssub.s32 1, %s8
  %s11 = scalar_select 0, %s10, %s8
  loop: start=0, step=1, limit=4
  $region2: #{tpu_custom_call.1} parent=0 // loop_pre_header
    _
  $region3: #{tpu_custom_call.1} parent=0 // loop_header
    %s13 = sphi 0, %s17
    %p14 = scmp.ge.s32.totalorder %s13, 4
    %s21 = sphi 0, %s21
    %s23 = sphi 0, %s21
    %s24 = sphi 0, %s23
    %s38 = sphi 0, %s24
    %s44 = sphi 0, %s46
    %s47 = sphi 0, %s44
    %s48 = sphi 0, %s47
    %s64 = sphi 0, %s48
    %s68 = sphi 0, %s68
    %s70 = sphi 0, %s68
    %s71 = sphi 0, %s70
    %s85 = sphi 0, %s71
    %s89 = sphi 0, %s89
    %s91 = sphi 0, %s89
    %s92 = sphi 0, %s91
    %s106 = sphi 0, %s92
    %s110 = sphi 0, %s110
    %s112 = sphi 0, %s110
    %s113 = sphi 0, %s112
    %s127 = sphi 0, %s113
    %s131 = sphi 0, %s131
    %s133 = sphi 0, %s131
    %s134 = sphi 0, %s133
    %s148 = sphi 0, %s134
    %s152 = sphi 0, %s152
    %s154 = sphi 0, %s152
    %s155 = sphi 0, %s154
    %s169 = sphi 0, %s155
    %s175 = sphi 0, %s177
    %s178 = sphi 0, %s175
    %s179 = sphi 0, %s178
    %s195 = sphi 0, %s179
  $region4: #{tpu_custom_call.1} parent=0 // loop_header_branch
    %16 = sbr.rel (%p14) target = $region8
  $region5: #{tpu_custom_call.1} parent=0 // loop_body
    %s18 = ssub.s32 %s13, 1
    %s19 = ssub.s32 %s13, 2
    %s20 = sadd.s32 %s13, 1
    %s22 = sadd.s32 %s21, 1
    %p25 = scmp.eq.s32.totalorder %s13, 1
    %p26 = scmp.ne.s32.totalorder %s21, %s23
    %p27 = scmp.eq.s32.totalorder %s13, 0
    %p28 = por %p26, %p27
    %p29 = scmp.ne.s32.totalorder %s21, %s23
    %p30 = scmp.eq.s32.totalorder %s18, 1
    %p31 = por %p29, %p30
    %p32 = scmp.ne.s32.totalorder %s23, %s24
    %p33 = scmp.eq.s32.totalorder %s18, 0
    %p34 = por %p32, %p33
    %p35 = scmp.ne.s32.totalorder %s23, %s24
    %p36 = scmp.eq.s32.totalorder %s19, 1
    %p37 = por %p35, %p36
    %p39 = scmp.ne.s32.totalorder %s24, %s38
    %p40 = scmp.eq.s32.totalorder %s19, 0
    %p41 = por %p39, %p40
    %s42 = ssub.s32 %s13, %s20
    %p43 = scmp.eq.s32.totalorder %s42, 0
    %s45 = sadd.s32 %s44, 1
    %s46 = scalar_select %p43, %s44, %s45
    %p49 = pneg %p43
    %p50 = scmp.eq.s32.totalorder %s13, 1
    %p51 = por %p49, %p50
    %p52 = scmp.ne.s32.totalorder %s44, %s47
    %p53 = scmp.eq.s32.totalorder %s13, 0
    %p54 = por %p52, %p53
    %p55 = scmp.ne.s32.totalorder %s44, %s47
    %p56 = scmp.eq.s32.totalorder %s18, 1
    %p57 = por %p55, %p56
    %p58 = scmp.ne.s32.totalorder %s47, %s48
    %p59 = scmp.eq.s32.totalorder %s18, 0
    %p60 = por %p58, %p59
    %p61 = scmp.ne.s32.totalorder %s47, %s48
    %p62 = scmp.eq.s32.totalorder %s19, 1
    %p63 = por %p61, %p62
    %p65 = scmp.ne.s32.totalorder %s48, %s64
    %p66 = scmp.eq.s32.totalorder %s19, 0
    %p67 = por %p65, %p66
    %s69 = sadd.s32 %s68, 1
    %p72 = scmp.eq.s32.totalorder %s13, 1
    %p73 = scmp.ne.s32.totalorder %s68, %s70
    %p74 = scmp.eq.s32.totalorder %s13, 0
    %p75 = por %p73, %p74
    %p76 = scmp.ne.s32.totalorder %s68, %s70
    %p77 = scmp.eq.s32.totalorder %s18, 1
    %p78 = por %p76, %p77
    %p79 = scmp.ne.s32.totalorder %s70, %s71
    %p80 = scmp.eq.s32.totalorder %s18, 0
    %p81 = por %p79, %p80
    %p82 = scmp.ne.s32.totalorder %s70, %s71
    %p83 = scmp.eq.s32.totalorder %s19, 1
    %p84 = por %p82, %p83
    %p86 = scmp.ne.s32.totalorder %s71, %s85
    %p87 = scmp.eq.s32.totalorder %s19, 0
    %p88 = por %p86, %p87
    %s90 = sadd.s32 %s89, 1
    %p93 = scmp.eq.s32.totalorder %s13, 1
    %p94 = scmp.ne.s32.totalorder %s89, %s91
    %p95 = scmp.eq.s32.totalorder %s13, 0
    %p96 = por %p94, %p95
    %p97 = scmp.ne.s32.totalorder %s89, %s91
    %p98 = scmp.eq.s32.totalorder %s18, 1
    %p99 = por %p97, %p98
    %p100 = scmp.ne.s32.totalorder %s91, %s92
    %p101 = scmp.eq.s32.totalorder %s18, 0
    %p102 = por %p100, %p101
    %p103 = scmp.ne.s32.totalorder %s91, %s92
    %p104 = scmp.eq.s32.totalorder %s19, 1
    %p105 = por %p103, %p104
    %p107 = scmp.ne.s32.totalorder %s92, %s106
    %p108 = scmp.eq.s32.totalorder %s19, 0
    %p109 = por %p107, %p108
    %s111 = sadd.s32 %s110, 1
    %p114 = scmp.eq.s32.totalorder %s13, 1
    %p115 = scmp.ne.s32.totalorder %s110, %s112
    %p116 = scmp.eq.s32.totalorder %s13, 0
    %p117 = por %p115, %p116
    %p118 = scmp.ne.s32.totalorder %s110, %s112
    %p119 = scmp.eq.s32.totalorder %s18, 1
    %p120 = por %p118, %p119
    %p121 = scmp.ne.s32.totalorder %s112, %s113
    %p122 = scmp.eq.s32.totalorder %s18, 0
    %p123 = por %p121, %p122
    %p124 = scmp.ne.s32.totalorder %s112, %s113
    %p125 = scmp.eq.s32.totalorder %s19, 1
    %p126 = por %p124, %p125
    %p128 = scmp.ne.s32.totalorder %s113, %s127
    %p129 = scmp.eq.s32.totalorder %s19, 0
    %p130 = por %p128, %p129
    %s132 = sadd.s32 %s131, 1
    %p135 = scmp.eq.s32.totalorder %s13, 1
    %p136 = scmp.ne.s32.totalorder %s131, %s133
    %p137 = scmp.eq.s32.totalorder %s13, 0
    %p138 = por %p136, %p137
    %p139 = scmp.ne.s32.totalorder %s131, %s133
    %p140 = scmp.eq.s32.totalorder %s18, 1
    %p141 = por %p139, %p140
    %p142 = scmp.ne.s32.totalorder %s133, %s134
    %p143 = scmp.eq.s32.totalorder %s18, 0
    %p144 = por %p142, %p143
    %p145 = scmp.ne.s32.totalorder %s133, %s134
    %p146 = scmp.eq.s32.totalorder %s19, 1
    %p147 = por %p145, %p146
    %p149 = scmp.ne.s32.totalorder %s134, %s148
    %p150 = scmp.eq.s32.totalorder %s19, 0
    %p151 = por %p149, %p150
    %s153 = sadd.s32 %s152, 1
    %p156 = scmp.eq.s32.totalorder %s13, 1
    %p157 = scmp.ne.s32.totalorder %s152, %s154
    %p158 = scmp.eq.s32.totalorder %s13, 0
    %p159 = por %p157, %p158
    %p160 = scmp.ne.s32.totalorder %s152, %s154
    %p161 = scmp.eq.s32.totalorder %s18, 1
    %p162 = por %p160, %p161
    %p163 = scmp.ne.s32.totalorder %s154, %s155
    %p164 = scmp.eq.s32.totalorder %s18, 0
    %p165 = por %p163, %p164
    %p166 = scmp.ne.s32.totalorder %s154, %s155
    %p167 = scmp.eq.s32.totalorder %s19, 1
    %p168 = por %p166, %p167
    %p170 = scmp.ne.s32.totalorder %s155, %s169
    %p171 = scmp.eq.s32.totalorder %s19, 0
    %p172 = por %p170, %p171
    %s173 = ssub.s32 %s13, %s20
    %p174 = scmp.eq.s32.totalorder %s173, 0
    %s176 = sadd.s32 %s175, 1
    %s177 = scalar_select %p174, %s175, %s176
    %p180 = pneg %p174
    %p181 = scmp.eq.s32.totalorder %s13, 1
    %p182 = por %p180, %p181
    %p183 = scmp.ne.s32.totalorder %s175, %s178
    %p184 = scmp.eq.s32.totalorder %s13, 0
    %p185 = por %p183, %p184
    %p186 = scmp.ne.s32.totalorder %s175, %s178
    %p187 = scmp.eq.s32.totalorder %s18, 1
    %p188 = por %p186, %p187
    %p189 = scmp.ne.s32.totalorder %s178, %s179
    %p190 = scmp.eq.s32.totalorder %s18, 0
    %p191 = por %p189, %p190
    %p192 = scmp.ne.s32.totalorder %s178, %s179
    %p193 = scmp.eq.s32.totalorder %s19, 1
    %p194 = por %p192, %p193
    %p196 = scmp.ne.s32.totalorder %s179, %s195
    %p197 = scmp.eq.s32.totalorder %s19, 0
    %p198 = por %p196, %p197
    %p199 = scmp.le.s32.totalorder 1, %s13
    %p200 = scmp.lt.s32.totalorder %s13, 3
    %p201 = pnand %p199, %p200
    %p202 = pneg %p201
    // Predicated region
    $region9: #{tpu_custom_call.1} parent=5 // pred_check
      _
    $region10: #{tpu_custom_call.1} parent=5 // pred_check_branch
      %204 = sbr.rel (%p201) target = $region12
    $region11: #{tpu_custom_call.1} parent=5 // pred_region
      %s205 = ssub.s32 %s13, 1
      // Predicated region
      $region13: #{tpu_custom_call.1} parent=11 // pred_check
        %p206 = pneg %p34
      $region14: #{tpu_custom_call.1} parent=11 // pred_check_branch
        %208 = sbr.rel (%p206) target = $region16
      $region15: #{tpu_custom_call.1} parent=11 // pred_region
        _
      $region16: #{tpu_custom_call.1} parent=11 // pred_fallthru
        _
      // Predicated region
      $region17: #{tpu_custom_call.1} parent=11 // pred_check
        %p209 = pneg %p81
      $region18: #{tpu_custom_call.1} parent=11 // pred_check_branch
        %211 = sbr.rel (%p209) target = $region20
      $region19: #{tpu_custom_call.1} parent=11 // pred_region
        _
      $region20: #{tpu_custom_call.1} parent=11 // pred_fallthru
        _
      // Predicated region
      $region21: #{tpu_custom_call.1} parent=11 // pred_check
        %p212 = pneg %p102
      $region22: #{tpu_custom_call.1} parent=11 // pred_check_branch
        %214 = sbr.rel (%p212) target = $region24
      $region23: #{tpu_custom_call.1} parent=11 // pred_region
        _
      $region24: #{tpu_custom_call.1} parent=11 // pred_fallthru
        _
      // Predicated region
      $region25: #{tpu_custom_call.1} parent=11 // pred_check
        %p215 = pneg %p123
      $region26: #{tpu_custom_call.1} parent=11 // pred_check_branch
        %217 = sbr.rel (%p215) target = $region28
      $region27: #{tpu_custom_call.1} parent=11 // pred_region
        _
      $region28: #{tpu_custom_call.1} parent=11 // pred_fallthru
        _
      // Predicated region
      $region29: #{tpu_custom_call.1} parent=11 // pred_check
        %p218 = pneg %p144
      $region30: #{tpu_custom_call.1} parent=11 // pred_check_branch
        %220 = sbr.rel (%p218) target = $region32
      $region31: #{tpu_custom_call.1} parent=11 // pred_region
        _
      $region32: #{tpu_custom_call.1} parent=11 // pred_fallthru
        _
      // Predicated region
      $region33: #{tpu_custom_call.1} parent=11 // pred_check
        %p221 = pneg %p165
      $region34: #{tpu_custom_call.1} parent=11 // pred_check_branch
        %223 = sbr.rel (%p221) target = $region36
      $region35: #{tpu_custom_call.1} parent=11 // pred_region
        _
      $region36: #{tpu_custom_call.1} parent=11 // pred_fallthru
        _
    $region12: #{tpu_custom_call.1} parent=5 // pred_fallthru
      _
    %p224 = scmp.lt.s32.totalorder %s13, 2
    // Predicated region
    $region37: #{tpu_custom_call.1} parent=5 // pred_check
      %p225 = pneg %p224
    $region38: #{tpu_custom_call.1} parent=5 // pred_check_branch
      %227 = sbr.rel (%p225) target = $region40
    $region39: #{tpu_custom_call.1} parent=5 // pred_region
      // Predicated region
      $region41: #{tpu_custom_call.1} parent=39 // pred_check
        %p228 = pneg %p54
      $region42: #{tpu_custom_call.1} parent=39 // pred_check_branch
        %230 = sbr.rel (%p228) target = $region44
      $region43: #{tpu_custom_call.1} parent=39 // pred_region
        %p231 = scmp.lt.s32.totalorder %s13, 1
        %s232 = scalar_select %p231, %s13, 1
        %s233 = smul.addr %s232, 8
        %s234 = smul.addr %s233, 8
        %s235 = scalar_lea.vmem %s1, %s234
      $region44: #{tpu_custom_call.1} parent=39 // pred_fallthru
        _
    $region40: #{tpu_custom_call.1} parent=5 // pred_fallthru
      _
    %p236 = scmp.le.s32.totalorder 1, %s13
    %p237 = scmp.lt.s32.totalorder %s13, 3
    %p238 = pnand %p236, %p237
    %p239 = pneg %p238
    // Predicated region
    $region45: #{tpu_custom_call.1} parent=5 // pred_check
      _
    $region46: #{tpu_custom_call.1} parent=5 // pred_check_branch
      %241 = sbr.rel (%p238) target = $region48
    $region47: #{tpu_custom_call.1} parent=5 // pred_region
      %s242 = ssub.s32 %s13, 1
      %p243 = pneg %p34
      %p244 = pneg %p31
      %p245 = scmp.lt.s32.totalorder %s18, 1
      %s246 = scalar_select %p245, %s18, 1
      %s247 = smul.addr %s246, 8
      %s248 = smul.addr %s247, 8
      %s249 = scalar_lea.vmem %s1, %s248
      %p250 = pneg %p60
      %p251 = pneg %p57
      %p252 = pneg %p81
      %p253 = pneg %p78
      %p254 = pneg %p102
      %p255 = pneg %p99
      %p256 = pneg %p123
      %p257 = pneg %p120
      %p258 = pneg %p144
      %p259 = pneg %p141
      %p260 = pneg %p165
      %p261 = pneg %p162
      %p262 = pneg %p191
      %p263 = pneg %p188
      %p264 = scmp.lt.s32.totalorder %s18, 1
      %s265 = scalar_select %p264, %s18, 1
      %s266 = smul.addr %s265, 8
      %s267 = smul.addr %s266, 8
      %s268 = scalar_lea.vmem %s7, %s267
      %p269 = scmp.lt.s32.totalorder %s18, 1
      %s270 = scalar_select %p269, %s18, 1
      %s271 = smul.addr %s270, 8
      %s272 = smul.addr %s271, 8
      %s273 = scalar_lea.vmem %s1, %s272
      %p274 = scmp.lt.s32.totalorder %s18, 1
      %s275 = scalar_select %p274, %s18, 1
      %s276 = smul.addr %s275, 8
      %s277 = smul.addr %s276, 8
      %s278 = scalar_lea.vmem %s7, %s277
      %v279 = vld [vmem:[%s273] sm:$0xff]
      %v280 = vld [vmem:[%s273 + $0x8] sm:$0xff]
      %v281 = vld [vmem:[%s273 + $0x10] sm:$0xff]
      %v282 = vld [vmem:[%s273 + $0x18] sm:$0xff]
      %v283 = vld [vmem:[%s273 + $0x20] sm:$0xff]
      %v284 = vld [vmem:[%s273 + $0x28] sm:$0xff]
      %v285 = vld [vmem:[%s273 + $0x30] sm:$0x7f]
      %v286 = vld [vmem:[%s273 + $0x38] sm:$0x7f]
      %v287 = vadd.f32 %v279, %v280
      %288 = vadd.xlane.f32.xlu0 %v287
      %v289 = vpop.xlane.xlu0 %288
      %v290 = vadd.f32 %v281, %v282
      %291 = vadd.xlane.f32.xlu0 %v290
      %v292 = vpop.xlane.xlu0 %291
      %v293 = vadd.f32 %v283, %v284
      %294 = vadd.xlane.f32.xlu0 %v293
      %v295 = vpop.xlane.xlu0 %294
      %vm296 = vcmask 1046528
      %v297 = vsel %vm296, %v285, 0.0
      %v298 = vsel %vm296, %v286, 0.0
      %v299 = vadd.f32 %v297, %v298
      %300 = vadd.xlane.f32.xlu0 %v299
      %v301 = vpop.xlane.xlu0 %300
      %v302 = vmul.f32 %v289, 0.00390625
      %v303 = vmul.f32 %v292, 0.00390625
      %v304 = vmul.f32 %v295, 0.00390625
      %v305 = vmul.f32 %v301, 0.00390625
      %s306 = scalar_lea.vmem %s0, %s18
      %v307 = vld [vmem:[%s306] sm:$0x1]
      %v308 = vld [vmem:[%s2] sm:$0x1]
      %310 = vset.pattern.permute.xlu0 0
      %311 = vperm.xlu0 %310, %v307
      %v312 = vpop.permute.xlu0 %311
      %v314 = vmul.f32 %v312, %v308
      %v315 = vld [vmem:[%s3] sm:$0xff]
      %v316 = vld [vmem:[%s3 + $0x8] sm:$0xff]
      %v317 = vld [vmem:[%s3 + $0x10] sm:$0xff]
      %v318 = vld [vmem:[%s3 + $0x18] sm:$0x7f]
      %v323 = vlaneseq
      %v324 = vand.u32 %v323, 127
      %v325 = vlaneseq
      %v326 = vshrl.u32 %v325, 7
      %v327 = vsub.s32 %v324, %v326
      %v328 = vrot.slane %v302, %v327
      %v329 = vadd.s32 %v324, 4294967288
      %v330 = vlaneseq
      %v331 = vshrl.u32 %v330, 7
      %v332 = vsub.s32 %v329, %v331
      %v333 = vrot.slane %v303, %v332
      %vm334 = vcmask 130112
      %v335 = vsel %vm334, %v333, %v328
      %v336 = vadd.s32 %v324, 4294967280
      %v337 = vlaneseq
      %v338 = vshrl.u32 %v337, 7
      %v339 = vsub.s32 %v336, %v338
      %v340 = vrot.slane %v304, %v339
      %vm341 = vcmask 195712
      %v342 = vsel %vm341, %v340, %v335
      %v343 = vadd.s32 %v324, 4294967272
      %v344 = vlaneseq
      %v345 = vshrl.u32 %v344, 7
      %v346 = vsub.s32 %v343, %v345
      %v347 = vrot.slane %v305, %v346
      %vm348 = vcmask 261312
      %v349 = vsel %vm348, %v347, %v342
      %vm350 = vcmask 252928
      %v351 = vsel %vm350, %v349, 0
      %v354 = vsel %vm296, %v318, 0
      %356 = vmatprep.subr.mxu0 0.0
      %357 = vmatpush1.msra.mxu0 %v315
      %358 = vmatprep.subr.mxu0 0.0
      %359 = vmatpush1.msra.mxu0 %v316
      %360 = vmatprep.subr.mxu0 0.0
      %361 = vmatpush1.msra.mxu0 %v317
      %362 = vmatprep.subr.mxu0 0.0
      %363 = vmatpush1.msra.mxu0 %v354
      %364 = vmatprep.subr.mxu0 0.0
      %365 = vmatpush1.msra.mxu0 0.0
      %366 = vmatprep.subr.mxu0 0.0
      %367 = vmatpush1.msra.mxu0 0.0
      %368 = vmatprep.subr.mxu0 0.0
      %369 = vmatpush1.msra.mxu0 0.0
      %370 = vmatprep.subr.mxu0 0.0
      %371 = vmatpush1.msra.mxu0 0.0
      %372 = vmatprep.subr.mxu0 0.0
      %373 = vmatpush1.msra.mxu0 0.0
      %374 = vmatprep.subr.mxu0 0.0
      %375 = vmatpush1.msra.mxu0 0.0
      %376 = vmatprep.subr.mxu0 0.0
      %377 = vmatpush1.msra.mxu0 0.0
      %378 = vmatprep.subr.mxu0 0.0
      %379 = vmatpush1.msra.mxu0 0.0
      %380 = vmatprep.subr.mxu0 0.0
      %381 = vmatpush1.msra.mxu0 0.0
      %382 = vmatprep.subr.mxu0 0.0
      %383 = vmatpush1.msra.mxu0 0.0
      %384 = vmatprep.subr.mxu0 0.0
      %385 = vmatpush1.msra.mxu0 0.0
      %386 = vmatprep.subr.mxu0 0.0
      %387 = vmatpush1.msra.mxu0 0.0
      %388 = vmatprep.subr.mxu0 0.0
      %389 = vmatpush1.msra.mxu0 0.0
      %390 = vmatprep.subr.mxu0 0.0
      %391 = vmatpush1.msra.mxu0 0.0
      %392 = vmatprep.subr.mxu0 0.0
      %393 = vmatpush1.msra.mxu0 0.0
      %394 = vmatprep.subr.mxu0 0.0
      %395 = vmatpush1.msra.mxu0 0.0
      %396 = vmatprep.subr.mxu0 0.0
      %397 = vmatpush1.msra.mxu0 0.0
      %398 = vmatprep.subr.mxu0 0.0
      %399 = vmatpush1.msra.mxu0 0.0
      %400 = vmatprep.subr.mxu0 0.0
      %401 = vmatpush1.msra.mxu0 0.0
      %402 = vmatprep.subr.mxu0 0.0
      %403 = vmatpush1.msra.mxu0 0.0
      %404 = vmatprep.subr.mxu0 0.0
      %405 = vmatpush1.msra.mxu0 0.0
      %406 = vmatprep.subr.mxu0 0.0
      %407 = vmatpush1.msra.mxu0 0.0
      %408 = vmatprep.subr.mxu0 0.0
      %409 = vmatpush1.msra.mxu0 0.0
      %410 = vmatprep.subr.mxu0 0.0
      %411 = vmatpush1.msra.mxu0 0.0
      %412 = vmatprep.subr.mxu0 0.0
      %413 = vmatpush1.msra.mxu0 0.0
      %414 = vmatprep.subr.mxu0 0.0
      %415 = vmatpush1.msra.mxu0 0.0
      %416 = vmatprep.subr.mxu0 0.0
      %417 = vmatpush1.msra.mxu0 0.0
      %418 = vmatprep.subr.mxu0 0.0
      %419 = vmatpush1.msra.mxu0 0.0
      %420 = vmatprep.mubr.f32.mxu0 0.0
      %421 = vmatmul.mubr.f32.gmra.mrb[0].mxu0 %v351
      %v422 = vpop.f32.mrb[0].mxu0
      %v423 = vadd.f32 0.0, %v422
      %v424 = vpop.f32.mrb[0].mxu0
      %425 = vdwg.mxu0
      %v426 = vadd.f32 %v314, %v423
      %v427 = vld [vmem:[%s4] sm:$0x1]
      %v428 = vadd.f32 %v426, %v427
      %v429 = vmax.f32 %v428, 0.0
      %v430 = vld [vmem:[%s5] sm:$0x3]
      %v431 = vld [vmem:[%s6] sm:$0x1]
      %vm432 = vcmask 15360
      %v434 = vsel %vm432, %v429, 0
      %vm436 = vcmask 1041408
      %v438 = vsel %vm436, %v430, 0
      %440 = vmatprep.subr.mxu0 0.0
      %441 = vmatpush1.msra.mxu0 %v438
      %442 = vmatprep.subr.mxu0 0.0
      %443 = vmatpush1.msra.mxu0 0.0
      %444 = vmatprep.subr.mxu0 0.0
      %445 = vmatpush1.msra.mxu0 0.0
      %446 = vmatprep.subr.mxu0 0.0
      %447 = vmatpush1.msra.mxu0 0.0
      %448 = vmatprep.subr.mxu0 0.0
      %449 = vmatpush1.msra.mxu0 0.0
      %450 = vmatprep.subr.mxu0 0.0
      %451 = vmatpush1.msra.mxu0 0.0
      %452 = vmatprep.subr.mxu0 0.0
      %453 = vmatpush1.msra.mxu0 0.0
      %454 = vmatprep.subr.mxu0 0.0
      %455 = vmatpush1.msra.mxu0 0.0
      %456 = vmatprep.subr.mxu0 0.0
      %457 = vmatpush1.msra.mxu0 0.0
      %458 = vmatprep.subr.mxu0 0.0
      %459 = vmatpush1.msra.mxu0 0.0
      %460 = vmatprep.subr.mxu0 0.0
      %461 = vmatpush1.msra.mxu0 0.0
      %462 = vmatprep.subr.mxu0 0.0
      %463 = vmatpush1.msra.mxu0 0.0
      %464 = vmatprep.subr.mxu0 0.0
      %465 = vmatpush1.msra.mxu0 0.0
      %466 = vmatprep.subr.mxu0 0.0
      %467 = vmatpush1.msra.mxu0 0.0
      %468 = vmatprep.subr.mxu0 0.0
      %469 = vmatpush1.msra.mxu0 0.0
      %470 = vmatprep.subr.mxu0 0.0
      %471 = vmatpush1.msra.mxu0 0.0
      %472 = vmatprep.subr.mxu0 0.0
      %473 = vmatpush1.msra.mxu0 0.0
      %474 = vmatprep.subr.mxu0 0.0
      %475 = vmatpush1.msra.mxu0 0.0
      %476 = vmatprep.subr.mxu0 0.0
      %477 = vmatpush1.msra.mxu0 0.0
      %478 = vmatprep.subr.mxu0 0.0
      %479 = vmatpush1.msra.mxu0 0.0
      %480 = vmatprep.subr.mxu0 0.0
      %481 = vmatpush1.msra.mxu0 0.0
      %482 = vmatprep.subr.mxu0 0.0
      %483 = vmatpush1.msra.mxu0 0.0
      %484 = vmatprep.subr.mxu0 0.0
      %485 = vmatpush1.msra.mxu0 0.0
      %486 = vmatprep.subr.mxu0 0.0
      %487 = vmatpush1.msra.mxu0 0.0
      %488 = vmatprep.subr.mxu0 0.0
      %489 = vmatpush1.msra.mxu0 0.0
      %490 = vmatprep.subr.mxu0 0.0
      %491 = vmatpush1.msra.mxu0 0.0
      %492 = vmatprep.subr.mxu0 0.0
      %493 = vmatpush1.msra.mxu0 0.0
      %494 = vmatprep.subr.mxu0 0.0
      %495 = vmatpush1.msra.mxu0 0.0
      %496 = vmatprep.subr.mxu0 0.0
      %497 = vmatpush1.msra.mxu0 0.0
      %498 = vmatprep.subr.mxu0 0.0
      %499 = vmatpush1.msra.mxu0 0.0
      %500 = vmatprep.subr.mxu0 0.0
      %501 = vmatpush1.msra.mxu0 0.0
      %502 = vmatprep.subr.mxu0 0.0
      %503 = vmatpush1.msra.mxu0 0.0
      %504 = vmatprep.mubr.f32.mxu0 0.0
      %505 = vmatmul.mubr.f32.gmra.mrb[0].mxu0 %v434
      %v506 = vpop.f32.mrb[0].mxu0
      %v507 = vadd.f32 %v431, %v506
      %v508 = vpop.f32.mrb[0].mxu0
      %509 = vdwg.mxu0
      %v510 = vxor.u32 %v507, 2147483648
      %v511 = vmul.f32 %v510, 1.442695
      %v512 = vpow.pop %v511
      %v513 = vadd.f32 %v512, 1.0
      %v514 = vrcp.pop %v513
      %v515 = vmul.f32 1.0, %v514
      %v516 = vlaneseq
      %v517 = vshrl.u32 %v516, 7
      %v518 = vsub.s32 0, %v517
      %v519 = vrot.slane %v515, %v518
      %521 = vbcast.lane.b32.xlu0 %v519, 256
      %v522 = vpop.permute.xlu0 %521
      %s524 = sor.u32 256, 8
      %525 = vbcast.lane.b32.xlu0 %v519, %s524
      %v526 = vpop.permute.xlu0 %525
      %s528 = sor.u32 256, 16
      %529 = vbcast.lane.b32.xlu0 %v519, %s528
      %v530 = vpop.permute.xlu0 %529
      %s532 = sor.u32 256, 24
      %533 = vbcast.lane.b32.xlu0 %v519, %s532
      %v534 = vpop.permute.xlu0 %533
      %v535 = vmul.f32 %v279, %v522
      %v536 = vmul.f32 %v280, %v522
      %v537 = vmul.f32 %v281, %v526
      %v538 = vmul.f32 %v282, %v526
      %v539 = vmul.f32 %v283, %v530
      %v540 = vmul.f32 %v284, %v530
      %v541 = vmul.f32 %v285, %v534
      %v542 = vmul.f32 %v286, %v534
      %543 = vst [vmem:[%s278] sm:$0xff] %v535
      %544 = vst [vmem:[%s278 + $0x8] sm:$0xff] %v536
      %545 = vst [vmem:[%s278 + $0x10] sm:$0xff] %v537
      %546 = vst [vmem:[%s278 + $0x18] sm:$0xff] %v538
      %547 = vst [vmem:[%s278 + $0x20] sm:$0xff] %v539
      %548 = vst [vmem:[%s278 + $0x28] sm:$0xff] %v540
      %549 = vst [vmem:[%s278 + $0x30] sm:$0x7f] %v541
      %550 = vst [vmem:[%s278 + $0x38] sm:$0x7f] %v542
      %p551 = scmp.lt.s32.totalorder %s18, 1
      %s552 = scalar_select %p551, %s18, 1
      %s553 = smul.addr %s552, 8
      %s554 = smul.addr %s553, 8
      %s555 = scalar_lea.vmem %s7, %s554
      // Predicated region
      $region49: #{tpu_custom_call.1} parent=47 // pred_check
        %p556 = pneg %p188
      $region50: #{tpu_custom_call.1} parent=47 // pred_check_branch
        %558 = sbr.rel (%p556) target = $region52
      $region51: #{tpu_custom_call.1} parent=47 // pred_region
        _
      $region52: #{tpu_custom_call.1} parent=47 // pred_fallthru
        _
    $region48: #{tpu_custom_call.1} parent=5 // pred_fallthru
      _
    %p559 = scmp.le.s32.totalorder 2, %s13
    // Predicated region
    $region53: #{tpu_custom_call.1} parent=5 // pred_check
      %p560 = pneg %p559
    $region54: #{tpu_custom_call.1} parent=5 // pred_check_branch
      %562 = sbr.rel (%p560) target = $region56
    $region55: #{tpu_custom_call.1} parent=5 // pred_region
      %s563 = ssub.s32 %s13, 2
      // Predicated region
      $region57: #{tpu_custom_call.1} parent=55 // pred_check
        %p564 = pneg %p194
      $region58: #{tpu_custom_call.1} parent=55 // pred_check_branch
        %566 = sbr.rel (%p564) target = $region60
      $region59: #{tpu_custom_call.1} parent=55 // pred_region
        %p567 = scmp.lt.s32.totalorder %s19, 1
        %s568 = scalar_select %p567, %s19, 1
        %s569 = smul.addr %s568, 8
        %s570 = smul.addr %s569, 8
        %s571 = scalar_lea.vmem %s7, %s570
      $region60: #{tpu_custom_call.1} parent=55 // pred_fallthru
        _
    $region56: #{tpu_custom_call.1} parent=5 // pred_fallthru
      _
  $region6: #{tpu_custom_call.1} parent=0 // loop_footer
    %s17 = sadd.s32 1, %s13
  $region7: #{tpu_custom_call.1} parent=0 // loop_footer_branch
    %12 = sbr.rel target = $region3
  $region8: #{tpu_custom_call.1} parent=0 // loop_exit
    _

</llo_original>
